<compile_context>
chip_gen: v7x
topology: tpu7x:2x2x1
jax: 0.10.0
libtpu: 0.0.40
codegen_flags: <defaults>
</compile_context>

<pallas_src>
import functools

import jax
import jax.numpy as jnp
from jax.experimental import pallas as pl
from jax.experimental.pallas import tpu as pltpu


def _grepu_kernel(x_ref, o_ref, *, slope, power, neg_inv_2var):
    # Load in source dtype, compute in f32 registers.
    x = x_ref[...].astype(jnp.float32)
    r = jnp.maximum(x, 0.0)                          # relu(x)              (VPU)
    gate = 1.0 - jnp.exp(neg_inv_2var * (r * r))     # saturating gate      (EUP)

    sr = r if slope == 1.0 else slope * r            # skip mul when slope==1

    p_int = int(power)
    if float(power) == float(p_int) and 0 <= p_int <= 8:
        # Integer-power fast path: pure VPU multiplies, no extra EUP work.
        if p_int == 0:
            powed = jnp.ones_like(sr)                # torch.pow(x, 0) == 1
        else:
            powed = sr
            for _ in range(p_int - 1):
                powed = powed * sr
    else:
        # General (non-integer) power via exp/log; only valid for sr >= 0.
        powed = jnp.where(
            sr > 0.0,
            jnp.exp(power * jnp.log(jnp.maximum(sr, 1e-38))),
            0.0,
        )

    o_ref[...] = (gate * powed).astype(o_ref.dtype)


def grepu(x, slope=1.0, power=2.0, var=0.0001, *, block_rows=512):
    """Apply gRePU elementwise. Any shape/dtype; output matches input dtype."""
    orig_shape = x.shape
    dtype = x.dtype
    n = x.size

    # Choose the widest lane count that divides n -> lane-dense slab with no
    # padding pass in the common case (activation sizes are powers of two).
    lanes = None
    for cand in (1024, 512, 256, 128):
        if n % cand == 0:
            lanes = cand
            break

    if lanes is None:
        # Fallback for awkward sizes: pad flat vector to a multiple of 1024.
        lanes = 1024
        n_pad = pl.cdiv(n, lanes) * lanes
        flat = jnp.pad(jnp.ravel(x), (0, n_pad - n))
    else:
        n_pad = n
        flat = jnp.ravel(x)          # layout-only reshape, no HBM pass

    slab = flat.reshape(n_pad // lanes, lanes)
    rows = slab.shape[0]
    br = min(block_rows, rows)       # br == rows (full dim) or a multiple of 8

    kernel = functools.partial(
        _grepu_kernel,
        slope=float(slope),
        power=float(power),
        neg_inv_2var=-1.0 / (2.0 * float(var)),
    )

    itemsize = jnp.dtype(dtype).itemsize
    cost = pl.CostEstimate(
        flops=6 * n_pad,
        transcendentals=n_pad,
        bytes_accessed=2 * n_pad * itemsize,
    )

    out_slab = pl.pallas_call(
        kernel,
        out_shape=jax.ShapeDtypeStruct((rows, lanes), dtype),
        grid_spec=pltpu.PrefetchScalarGridSpec(
            num_scalar_prefetch=0,
            grid=(pl.cdiv(rows, br),),
            in_specs=[pl.BlockSpec((br, lanes), lambda i: (i, 0))],
            out_specs=pl.BlockSpec((br, lanes), lambda i: (i, 0)),
        ),
        compiler_params=pltpu.CompilerParams(
            # TODO(synk): switch to pltpu.CORE_PARALLEL on v7x if profiling
            # shows only one TensorCore active.
            dimension_semantics=("parallel",),
        ),
        cost_estimate=cost,
    )(slab)

    if n_pad != n:
        out = out_slab.reshape(-1)[:n].reshape(orig_shape)
    else:
        out = out_slab.reshape(orig_shape)
    return out


def grepu_reference(x, slope=1.0, power=2.0, var=0.0001):
    r = jnp.maximum(x.astype(jnp.float32), 0.0)
    return ((1.0 - jnp.exp(-(r ** 2) / (2.0 * var))) * (slope * r) ** power).astype(
        x.dtype
    )


if __name__ == "__main__":
    key = jax.random.PRNGKey(0)
    # Shape consistent with a typical NCHW activation tensor.
    x = jax.random.normal(key, (2, 4, 16, 16), dtype=jnp.float32)

    y = grepu(x, slope=1.0, power=2.0, var=0.0001)
    y = jax.block_until_ready(y)

    y_ref = grepu_reference(x, slope=1.0, power=2.0, var=0.0001)
    assert y.shape == x.shape and y.dtype == x.dtype
    assert jnp.allclose(y, y_ref, atol=1e-5, rtol=1e-5), "mismatch vs reference"

    # Also exercise the non-integer-power (exp/log) path once.
    y2 = jax.block_until_ready(grepu(x, slope=1.5, power=2.5, var=0.0001))
    y2_ref = grepu_reference(x, slope=1.5, power=2.5, var=0.0001)
    assert jnp.allclose(y2, y2_ref, atol=1e-4, rtol=1e-4), "mismatch (non-int power)"

    print("KERNEL_OK")
</pallas_src>

<mosaic_0001>
module attributes {stable_mosaic.version = 11 : i64} {
  func.func @_grepu_kernel(%arg0: i32, %arg1: memref<2x1024xf32, #tpu.memory_space<vmem>>, %arg2: memref<2x1024xf32, #tpu.memory_space<vmem>>) attributes {dimension_semantics = [#tpu.dimension_semantics<parallel>], iteration_bounds = array<i64: 1>, scalar_prefetch = 0 : i64, scratch_operands = 0 : i64, tpu.core_type = #tpu.core_type<tc>, window_params = [{transform_indices = @transform_0, window_bounds = array<i64: 2, 1024>}, {transform_indices = @transform_1, window_bounds = array<i64: 2, 1024>}]} {
    %c0 = arith.constant 0 : index
    %c0_0 = arith.constant 0 : index
    %0 = vector.load %arg1[%c0, %c0_0] : memref<2x1024xf32, #tpu.memory_space<vmem>>, vector<2x1024xf32>
    %cst = arith.constant 0.000000e+00 : f32
    %1 = vector.broadcast %cst : f32 to vector<2x1024xf32>
    %2 = arith.maximumf %0, %1 : vector<2x1024xf32>
    %3 = arith.mulf %2, %2 : vector<2x1024xf32>
    %cst_1 = arith.constant -5.000000e+03 : f32
    %4 = vector.broadcast %cst_1 : f32 to vector<2x1024xf32>
    %5 = arith.mulf %4, %3 : vector<2x1024xf32>
    %6 = math.exp %5 : vector<2x1024xf32>
    %cst_2 = arith.constant 1.000000e+00 : f32
    %7 = vector.broadcast %cst_2 : f32 to vector<2x1024xf32>
    %8 = arith.subf %7, %6 : vector<2x1024xf32>
    %9 = arith.mulf %2, %2 : vector<2x1024xf32>
    %10 = arith.mulf %8, %9 : vector<2x1024xf32>
    %c0_3 = arith.constant 0 : index
    %c0_4 = arith.constant 0 : index
    %11 = vector.load %arg2[%c0_3, %c0_4] : memref<2x1024xf32, #tpu.memory_space<vmem>>, vector<2x1024xf32>
    tpu.vector_store %arg2[%c0_3, %c0_4], %10 {strides = array<i32>} : memref<2x1024xf32, #tpu.memory_space<vmem>>, vector<2x1024xf32>,
    return
  }
  func.func @transform_0(%arg0: i32) -> (i32, i32) {
    %c0_i32 = arith.constant 0 : i32
    %c0_i32_0 = arith.constant 0 : i32
    return %arg0, %c0_i32 : i32, i32
  }
  func.func @transform_1(%arg0: i32) -> (i32, i32) {
    %c0_i32 = arith.constant 0 : i32
    %c0_i32_0 = arith.constant 0 : i32
    return %arg0, %c0_i32 : i32, i32
  }
}

</mosaic_0001>

<llo_original>
// kernel: tpu_custom_call.1
$region0: #{tpu_custom_call.1}
  #allocation0 [shape = 'u32[]', space=smem, size = 0x4, offset = 0x4, fixed_abs, tag = 'smem constant byte address 0x4 - core index']
  #allocation1 [shape = 'u32[144,128]{1,0:T(1,128)}', space=vmem, size = 0x12000, scoped, tag = 'internal scratch']
  %s0 = inlined_call_operand.hbm [shape: f32[2,1024], index: 0, kind: input, shape index: {}]
  %s1 = inlined_call_operand.hbm [shape: f32[2,1024], index: 1, kind: output, shape index: {}]
  %s2 = sld [smem:[#allocation0]]
  $region18: #{tpu_custom_call.1} parent=0
    _
  %s4 = ssub.s32 1, %s2
  %s5 = scalar_select 0, %s4, %s2
  $region1: #{tpu_custom_call.1} parent=0
    #allocation2 [shape = 'u8[8192]{0}', space=vmem, size = 0x2000, scoped, tag = 'input window, operand 0, single buffered']
    #allocation3 [shape = 's32[1]{0}', space=sflag, size = 0x4, scoped, tag = 'scoped memory for tpu_custom_call.1']
    #allocation4 [shape = 's32[1]{0}', space=sflag, size = 0x4, scoped, tag = 'scoped memory for tpu_custom_call.1']
    #allocation5 [shape = 'u8[8192]{0}', space=vmem, size = 0x2000, scoped, tag = 'output window, operand 0, single buffered']
    %6 = vsyncpa [#allocation3], 0
    %7 = vsyncpa [#allocation4], 0
    // Predicated region
    $region2: #{tpu_custom_call.1} parent=1 // pred_check
      _
    $region3: #{tpu_custom_call.1} parent=1 // pred_check_branch
      %9 = sbr.rel (0) target = $region5
    $region4: #{tpu_custom_call.1} parent=1 // pred_region
      %s11 = ssub.s32 256, 256
      %12 = vsyncadd [#allocation3], %s11
      %s14 = sshll.u32 [#allocation2], 4
      %s15 = int_to_ptr.vmem [resolvable:$true] %s14
      %17 = dma.hbm_to_vmem [thread:$0]  %s0, 256, %s15, [#allocation3]
    $region5: #{tpu_custom_call.1} parent=1 // pred_fallthru
      _
    // Predicated region
    $region6: #{tpu_custom_call.1} parent=1 // pred_check
      _
    $region7: #{tpu_custom_call.1} parent=1 // pred_check_branch
      %19 = sbr.rel (0) target = $region9
    $region8: #{tpu_custom_call.1} parent=1 // pred_region
      %20 = dma.done [#allocation3], 256
    $region9: #{tpu_custom_call.1} parent=1 // pred_fallthru
      _
    %v21 = vld [vmem:[#allocation2] sm:$0xff]
    %v22 = vld [vmem:[#allocation2 + $0x8] sm:$0xff]
    %v23 = vmax.f32 %v21, 0.0
    %v24 = vmax.f32 %v22, 0.0
    %v25 = vmul.f32 %v23, %v23
    %v26 = vmul.f32 %v24, %v24
    %v27 = vmul.f32 %v25, -5000.0
    %v28 = vmul.f32 %v26, -5000.0
    %v29 = vmul.f32 %v27, 1.442695
    %v30 = vpow.pop %v29
    %v31 = vmul.f32 %v28, 1.442695
    %v32 = vpow.pop %v31
    %v33 = vsub.f32 1.0, %v30
    %v34 = vsub.f32 1.0, %v32
    %v35 = vmul.f32 %v33, %v25
    %v36 = vmul.f32 %v34, %v26
    %37 = vst [vmem:[#allocation5] sm:$0xff] %v35
    %38 = vst [vmem:[#allocation5 + $0x8] sm:$0xff] %v36
    // Predicated region
    $region10: #{tpu_custom_call.1} parent=1 // pred_check
      _
    $region11: #{tpu_custom_call.1} parent=1 // pred_check_branch
      %40 = sbr.rel (0) target = $region13
    $region12: #{tpu_custom_call.1} parent=1 // pred_region
      %s42 = ssub.s32 256, 256
      %43 = vsyncadd [#allocation4], %s42
      %s45 = sshll.u32 [#allocation5], 4
      %s46 = int_to_ptr.vmem [resolvable:$true] %s45
      %48 = dma.vmem_to_hbm [thread:$0]  %s46, 256, %s1, [#allocation4]
    $region13: #{tpu_custom_call.1} parent=1 // pred_fallthru
      _
    // Predicated region
    $region14: #{tpu_custom_call.1} parent=1 // pred_check
      _
    $region15: #{tpu_custom_call.1} parent=1 // pred_check_branch
      %50 = sbr.rel (0) target = $region17
    $region16: #{tpu_custom_call.1} parent=1 // pred_region
      %51 = dma.done [#allocation4], 256
    $region17: #{tpu_custom_call.1} parent=1 // pred_fallthru
      _
    %52 = vsyncpa [#allocation3], 1
    %53 = vsyncpa [#allocation4], 1

</llo_original>
